<compile_context>
chip_gen: v6e
topology: v6e:2x2x1
jax: 0.10.0
libtpu: 0.0.40
codegen_flags: <defaults>
</compile_context>

<pallas_src>
import functools

import jax
import jax.numpy as jnp
from jax.experimental import pallas as pl
from jax.experimental.pallas import tpu as pltpu

# ModelUtil.NAIVE_EPS is not given in the snippet; use a small deterministic eps.
NAIVE_EPS = 1e-6


def _msse_kernel(past_ref, future_ref, pred_ref, loss_ref, nan_ref, *,
                 eps, start, batch):
    """One batch block: partial sum of per-sample losses + NaN flag."""
    block_b = pred_ref.shape[0]
    b0 = pl.program_id(0) * block_b
    # Mask rows of a (possibly padded) final batch block.
    row = b0 + jax.lax.broadcasted_iota(jnp.int32, (block_b, 1), 0)   # (TB, 1)
    valid = row < batch                                               # (TB, 1)

    pred = pred_ref[...].astype(jnp.float32)        # (TB, Tf, F)
    future = future_ref[...].astype(jnp.float32)    # (TB, Tf, F)
    err = pred - future
    num = jnp.mean(err * err, axis=1)               # (TB, F) mean over time

    past = past_ref[...].astype(jnp.float32)        # (TB, Tp, F)
    w = past[:, start:, :]                          # last `limit_naive` steps
    diff = w[:, :-1, :] - w[:, 1:, :]               # naive one-step difference
    den = jnp.mean(diff * diff, axis=1) + eps       # (TB, F)

    loss = num * pl.reciprocal(den, approx=False)   # (TB, F)
    per_row = jnp.sum(loss, axis=-1, keepdims=True)         # sum over features
    per_row = jnp.where(valid, per_row, 0.0)
    loss_ref[0, 0] = jnp.sum(per_row)

    # NaN flag for the PyTorch NaNPredException path (checked lazily by caller,
    # no extra HBM pass over pred and no pre-kernel host sync).
    nan_ref[0, 0] = jnp.any(jnp.isnan(pred) & valid[:, :, None]).astype(jnp.int32)


def _pick_block_b(batch, t_past, t_future, feat, itemsize,
                  vmem_block_budget=8 * 1024 * 1024):
    """Largest batch block whose double-buffered input tiles fit the budget.

    VMEM stores the last two dims padded to (8, 128) tiles; the budget is kept
    well under the smallest scoped VMEM (v7x: 32 MiB scoped / 64 MiB physical).
    """
    lanes = -(-feat // 128) * 128
    tp = -(-t_past // 8) * 8
    tf = -(-t_future // 8) * 8
    per_row = (tp + 2 * tf) * lanes * itemsize
    tb = max(1, vmem_block_budget // (2 * per_row))   # 2x: double buffering
    return int(min(batch, tb))


def _msse_partials(past, future, pred, *, limit_naive, eps, block_b=None):
    """Runs the kernel; returns per-block (loss partial sums, NaN flags)."""
    if past.ndim != 3 or future.ndim != 3 or pred.ndim != 3:
        # TODO(synk): PyTorch naive() also supports unbatched (<3-dim) inputs;
        # only the batched (B, T, F) path is implemented here.
        raise ValueError("expected (batch, time, feature) inputs")
    if pred.shape != future.shape or past.shape[0] != pred.shape[0] \
            or past.shape[-1] != pred.shape[-1]:
        raise ValueError("shape mismatch between past/future/pred")

    batch, t_past, feat = past.shape
    t_future = future.shape[1]
    window = t_past if not limit_naive else min(int(limit_naive), t_past)
    if window < 2:
        raise ValueError("need at least 2 past steps for the naive forecast")
    start = t_past - window

    if block_b is None:
        itemsize = max(past.dtype.itemsize, future.dtype.itemsize,
                       pred.dtype.itemsize)
        block_b = _pick_block_b(batch, t_past, t_future, feat, itemsize)
    nb = pl.cdiv(batch, block_b)

    kernel = functools.partial(_msse_kernel, eps=float(eps), start=start,
                               batch=batch)

    bytes_accessed = (past.size * past.dtype.itemsize
                      + future.size * future.dtype.itemsize
                      + pred.size * pred.dtype.itemsize + nb * 8)
    flops = 3 * pred.size + 3 * batch * (window - 1) * feat + 4 * batch * feat
    cost = pl.CostEstimate(flops=int(flops), transcendentals=int(batch * feat),
                           bytes_accessed=int(bytes_accessed))

    loss_parts, nan_parts = pl.pallas_call(
        kernel,
        grid=(nb,),
        in_specs=[
            pl.BlockSpec((block_b, t_past, feat), lambda i: (i, 0, 0)),
            pl.BlockSpec((block_b, t_future, feat), lambda i: (i, 0, 0)),
            pl.BlockSpec((block_b, t_future, feat), lambda i: (i, 0, 0)),
        ],
        out_specs=(
            pl.BlockSpec((1, 1), lambda i: (i, 0),
                         memory_space=pltpu.MemorySpace.SMEM),
            pl.BlockSpec((1, 1), lambda i: (i, 0),
                         memory_space=pltpu.MemorySpace.SMEM),
        ),
        out_shape=(
            jax.ShapeDtypeStruct((nb, 1), jnp.float32),
            jax.ShapeDtypeStruct((nb, 1), jnp.int32),
        ),
        compiler_params=pltpu.CompilerParams(
            dimension_semantics=("parallel",),        # megacore split on v7x
            vmem_limit_bytes=32 * 1024 * 1024,
        ),
        cost_estimate=cost,
    )(past, future, pred)
    return loss_parts, nan_parts


def msse_loss_and_nan_flag(past, future, pred, *, reduction="sum",
                           limit_naive=30, eps=NAIVE_EPS, block_b=None):
    """Jit-safe MSSELoss forward. Returns (loss, has_nan_in_pred)."""
    if reduction not in ("sum", "mean", "avg"):
        raise ValueError(f"Invalid reduction {reduction}")
    loss_parts, nan_parts = _msse_partials(
        past, future, pred, limit_naive=limit_naive, eps=eps, block_b=block_b)
    loss = jnp.sum(loss_parts)
    if reduction in ("mean", "avg"):
        loss = loss / past.shape[0]
    has_nan = jnp.sum(nan_parts) > 0
    return loss, has_nan


def msse_loss(past, future, pred, *, reduction="sum", limit_naive=30,
              eps=NAIVE_EPS, block_b=None):
    """MSSELoss.forward (loss only); fully jax.jit compatible."""
    loss, _ = msse_loss_and_nan_flag(past, future, pred, reduction=reduction,
                                     limit_naive=limit_naive, eps=eps,
                                     block_b=block_b)
    return loss


def msse_loss_checked(past, future, pred, **kwargs):
    """Eager helper mirroring PyTorch's NaNPredException: syncs only on the
    single scalar flag the kernel already produced (not jit-compatible)."""
    loss, has_nan = msse_loss_and_nan_flag(past, future, pred, **kwargs)
    if bool(has_nan):
        raise ValueError("Pred has NaN!")
    return loss


def _msse_loss_ref(past, future, pred, *, reduction="sum", limit_naive=30,
                   eps=NAIVE_EPS):
    """Pure-JAX reference mirroring the PyTorch code, for validation."""
    if limit_naive:
        past = past[:, -limit_naive:, :]
    num = jnp.mean(jnp.square(pred - future), axis=-2)
    diff = past[:, :-1, :] - past[:, 1:, :]
    den = jnp.mean(jnp.square(diff), axis=-2) + eps
    loss = num / den
    loss = jnp.sum(loss, axis=-1)
    if reduction in ("mean", "avg"):
        return jnp.mean(loss, axis=0)
    return jnp.sum(loss, axis=0)


if __name__ == "__main__":
    key = jax.random.PRNGKey(0)
    k1, k2, k3 = jax.random.split(key, 3)

    B, T_past, T_fut, F = 2, 36, 8, 4    # past longer than limit_naive=30
    past = jax.random.normal(k1, (B, T_past, F), dtype=jnp.float32)
    future = jax.random.normal(k2, (B, T_fut, F), dtype=jnp.float32)
    pred = future + 0.1 * jax.random.normal(k3, (B, T_fut, F), dtype=jnp.float32)

    # 'sum' reduction, under jit (the wrapper no longer host-syncs or slices).
    loss_fn = jax.jit(functools.partial(msse_loss, reduction="sum",
                                        limit_naive=30, eps=NAIVE_EPS))
    out = jax.block_until_ready(loss_fn(past, future, pred))
    ref = _msse_loss_ref(past, future, pred, reduction="sum", limit_naive=30,
                         eps=NAIVE_EPS)
    assert jnp.allclose(out, ref, rtol=1e-5, atol=1e-5), (out, ref)

    # 'mean' reduction, eager.
    out_m = jax.block_until_ready(
        msse_loss(past, future, pred, reduction="mean", limit_naive=30))
    ref_m = _msse_loss_ref(past, future, pred, reduction="mean", limit_naive=30)
    assert jnp.allclose(out_m, ref_m, rtol=1e-5, atol=1e-5), (out_m, ref_m)

    # NaN flag (replaces the host-side NaNPredException scan of pred).
    _, clean_flag = msse_loss_and_nan_flag(past, future, pred)
    pred_nan = pred.at[0, 0, 0].set(jnp.nan)
    _, nan_flag = msse_loss_and_nan_flag(past, future, pred_nan)
    assert not bool(jax.block_until_ready(clean_flag))
    assert bool(jax.block_until_ready(nan_flag))

    print("KERNEL_OK")
</pallas_src>

<mosaic_0001>
module attributes {stable_mosaic.version = 11 : i64} {
  func.func @_msse_kernel(%arg0: i32, %arg1: memref<2x36x4xf32, #tpu.memory_space<vmem>>, %arg2: memref<2x8x4xf32, #tpu.memory_space<vmem>>, %arg3: memref<2x8x4xf32, #tpu.memory_space<vmem>>, %arg4: memref<1x1xf32, #tpu.memory_space<smem>>, %arg5: memref<1x1xi32, #tpu.memory_space<smem>>) attributes {dimension_semantics = [#tpu.dimension_semantics<parallel>], iteration_bounds = array<i64: 1>, scalar_prefetch = 0 : i64, scratch_operands = 0 : i64, tpu.core_type = #tpu.core_type<tc>, window_params = [{transform_indices = @transform_0, window_bounds = array<i64: 2, 36, 4>}, {transform_indices = @transform_1, window_bounds = array<i64: 2, 8, 4>}, {transform_indices = @transform_2, window_bounds = array<i64: 2, 8, 4>}, {transform_indices = @transform_3, window_bounds = array<i64: 1, 1>}, {transform_indices = @transform_4, window_bounds = array<i64: 1, 1>}]} {
    %c2_i32 = arith.constant 2 : i32
    %0 = arith.muli %arg0, %c2_i32 : i32
    %1 = tpu.iota {dimensions = array<i32: 0>} : vector<2x1xi32>
    %2 = vector.broadcast %0 : i32 to vector<2x1xi32>
    %3 = arith.addi %2, %1 : vector<2x1xi32>
    %c2_i32_0 = arith.constant 2 : i32
    %4 = vector.broadcast %c2_i32_0 : i32 to vector<2x1xi32>
    %5 = arith.cmpi slt, %3, %4 : vector<2x1xi32>
    %c0 = arith.constant 0 : index
    %c0_1 = arith.constant 0 : index
    %c0_2 = arith.constant 0 : index
    %6 = vector.load %arg3[%c0, %c0_1, %c0_2] : memref<2x8x4xf32, #tpu.memory_space<vmem>>, vector<2x8x4xf32>
    %c0_3 = arith.constant 0 : index
    %c0_4 = arith.constant 0 : index
    %c0_5 = arith.constant 0 : index
    %7 = vector.load %arg2[%c0_3, %c0_4, %c0_5] : memref<2x8x4xf32, #tpu.memory_space<vmem>>, vector<2x8x4xf32>
    %8 = arith.subf %6, %7 : vector<2x8x4xf32>
    %9 = arith.mulf %8, %8 : vector<2x8x4xf32>
    %cst = arith.constant dense<0.000000e+00> : vector<2x4xf32>
    %10 = vector.multi_reduction <add>, %9, %cst [1] : vector<2x8x4xf32> to vector<2x4xf32>
    %cst_6 = arith.constant 8.000000e+00 : f32
    %11 = vector.broadcast %cst_6 : f32 to vector<2x4xf32>
    %12 = arith.divf %10, %11 : vector<2x4xf32>
    %c0_7 = arith.constant 0 : index
    %c0_8 = arith.constant 0 : index
    %c0_9 = arith.constant 0 : index
    %13 = vector.load %arg1[%c0_7, %c0_8, %c0_9] : memref<2x36x4xf32, #tpu.memory_space<vmem>>, vector<2x36x4xf32>
    %14 = vector.extract_strided_slice %13 {offsets = [0, 6, 0], sizes = [2, 30, 4], strides = [1, 1, 1]} : vector<2x36x4xf32> to vector<2x30x4xf32>
    %15 = vector.extract_strided_slice %14 {offsets = [0, 0, 0], sizes = [2, 29, 4], strides = [1, 1, 1]} : vector<2x30x4xf32> to vector<2x29x4xf32>
    %16 = vector.extract_strided_slice %14 {offsets = [0, 1, 0], sizes = [2, 29, 4], strides = [1, 1, 1]} : vector<2x30x4xf32> to vector<2x29x4xf32>
    %17 = arith.subf %15, %16 : vector<2x29x4xf32>
    %18 = arith.mulf %17, %17 : vector<2x29x4xf32>
    %cst_10 = arith.constant dense<0.000000e+00> : vector<2x4xf32>
    %19 = vector.multi_reduction <add>, %18, %cst_10 [1] : vector<2x29x4xf32> to vector<2x4xf32>
    %cst_11 = arith.constant 2.900000e+01 : f32
    %20 = vector.broadcast %cst_11 : f32 to vector<2x4xf32>
    %21 = arith.divf %19, %20 : vector<2x4xf32>
    %cst_12 = arith.constant 9.99999997E-7 : f32
    %22 = vector.broadcast %cst_12 : f32 to vector<2x4xf32>
    %23 = arith.addf %21, %22 : vector<2x4xf32>
    %24 = tpu.reciprocal %23 : vector<2x4xf32> -> vector<2x4xf32>
    %25 = arith.mulf %12, %24 : vector<2x4xf32>
    %cst_13 = arith.constant dense<0.000000e+00> : vector<2xf32>
    %26 = vector.multi_reduction <add>, %25, %cst_13 [1] : vector<2x4xf32> to vector<2xf32>
    %27 = vector.shape_cast %26 : vector<2xf32> to vector<2x1xf32>
    %cst_14 = arith.constant 0.000000e+00 : f32
    %28 = vector.broadcast %cst_14 : f32 to vector<2x1xf32>
    %29 = arith.select %5, %27, %28 : vector<2x1xi1>, vector<2x1xf32>
    %30 = vector.shape_cast %29 : vector<2x1xf32> to vector<1x2x1xf32>
    %cst_15 = arith.constant dense<0.000000e+00> : vector<1xf32>
    %31 = vector.multi_reduction <add>, %30, %cst_15 [1, 2] : vector<1x2x1xf32> to vector<1xf32>
    %32 = vector.shape_cast %31 : vector<1xf32> to vector<1x1x1xf32>
    %33 = vector.extract %32[0, 0, 0] : f32 from vector<1x1x1xf32>
    %c0_16 = arith.constant 0 : index
    %c0_17 = arith.constant 0 : index
    %34 = memref.load %arg4[%c0_16, %c0_17] : memref<1x1xf32, #tpu.memory_space<smem>>
    memref.store %33, %arg4[%c0_16, %c0_17] : memref<1x1xf32, #tpu.memory_space<smem>>
    %35 = arith.cmpf one, %6, %6 : vector<2x8x4xf32>
    %36 = vector.shape_cast %5 : vector<2x1xi1> to vector<2x1x1xi1>
    %37 = vector.broadcast %36 : vector<2x1x1xi1> to vector<2x8x4xi1>
    %38 = arith.andi %35, %37 : vector<2x8x4xi1>
    %cst_18 = arith.constant 1.000000e+00 : f32
    %cst_19 = arith.constant 0.000000e+00 : f32
    %39 = vector.broadcast %cst_18 : f32 to vector<2x8x4xf32>
    %40 = vector.broadcast %cst_19 : f32 to vector<2x8x4xf32>
    %41 = arith.select %38, %39, %40 : vector<2x8x4xi1>, vector<2x8x4xf32>
    %42 = vector.shape_cast %41 : vector<2x8x4xf32> to vector<1x2x8x4xf32>
    %cst_20 = arith.constant dense<0xFF800000> : vector<1xf32>
    %43 = vector.multi_reduction <maximumf>, %42, %cst_20 [1, 2, 3] : vector<1x2x8x4xf32> to vector<1xf32>
    %44 = vector.shape_cast %43 : vector<1xf32> to vector<1x1x1x1xf32>
    %45 = vector.extract %44[0, 0, 0, 0] : f32 from vector<1x1x1x1xf32>
    %cst_21 = arith.constant 0.000000e+00 : f32
    %46 = arith.cmpf ogt, %45, %cst_21 : f32
    %47 = arith.extui %46 : i1 to i32
    %c0_22 = arith.constant 0 : index
    %c0_23 = arith.constant 0 : index
    %48 = memref.load %arg5[%c0_22, %c0_23] : memref<1x1xi32, #tpu.memory_space<smem>>
    memref.store %47, %arg5[%c0_22, %c0_23] : memref<1x1xi32, #tpu.memory_space<smem>>
    return
  }
  func.func @transform_0(%arg0: i32) -> (i32, i32, i32) {
    %c0_i32 = arith.constant 0 : i32
    %c0_i32_0 = arith.constant 0 : i32
    %c0_i32_1 = arith.constant 0 : i32
    return %arg0, %c0_i32, %c0_i32_0 : i32, i32, i32
  }
  func.func @transform_1(%arg0: i32) -> (i32, i32, i32) {
    %c0_i32 = arith.constant 0 : i32
    %c0_i32_0 = arith.constant 0 : i32
    %c0_i32_1 = arith.constant 0 : i32
    return %arg0, %c0_i32, %c0_i32_0 : i32, i32, i32
  }
  func.func @transform_2(%arg0: i32) -> (i32, i32, i32) {
    %c0_i32 = arith.constant 0 : i32
    %c0_i32_0 = arith.constant 0 : i32
    %c0_i32_1 = arith.constant 0 : i32
    return %arg0, %c0_i32, %c0_i32_0 : i32, i32, i32
  }
  func.func @transform_3(%arg0: i32) -> (i32, i32) {
    %c0_i32 = arith.constant 0 : i32
    %c0_i32_0 = arith.constant 0 : i32
    return %arg0, %c0_i32 : i32, i32
  }
  func.func @transform_4(%arg0: i32) -> (i32, i32) {
    %c0_i32 = arith.constant 0 : i32
    %c0_i32_0 = arith.constant 0 : i32
    return %arg0, %c0_i32 : i32, i32
  }
}

</mosaic_0001>

<llo_original>
// kernel: msse_loss.1
$region0: #{msse_loss.1}
  #allocation0 [shape = 'u32[]', space=smem, size = 0x4, offset = 0x4, fixed_abs, tag = 'smem constant byte address 0x4 - core index']
  #allocation1 [shape = 'u32[144,128]{1,0:T(1,128)}', space=vmem, size = 0x12000, scoped, tag = 'internal scratch']
  %s0 = inlined_call_operand.vmem [shape: f32[2,36,4], index: 0, kind: input, shape index: {}]
  %s1 = inlined_call_operand.vmem [shape: f32[2,8,4], index: 1, kind: input, shape index: {}]
  %s2 = inlined_call_operand.vmem [shape: f32[2,8,4], index: 2, kind: input, shape index: {}]
  %s3 = inlined_call_operand.hbm [shape: f32[1,1], index: 3, kind: output, shape index: {0}]
  %s4 = inlined_call_operand.hbm [shape: s32[1,1], index: 4, kind: output, shape index: {1}]
  %5 = xla_tuple %s3, %s4
  %s6 = sld [smem:[#allocation0]]
  $region30: #{msse_loss.1} parent=0
    _
  %s8 = ssub.s32 1, %s6
  %s9 = scalar_select 0, %s8, %s6
  $region1: #{msse_loss.1} parent=0
    #allocation2 [shape = 'u8[512]{0}', space=smem, size = 0x200, scoped, tag = 'output window, operand 0, single buffered']
    #allocation3 [shape = 's32[1]{0}', space=sflag, size = 0x4, scoped, tag = 'scoped memory for msse_loss.1']
    #allocation4 [shape = 'u8[512]{0}', space=smem, size = 0x200, scoped, tag = 'output window, operand 1, single buffered']
    #allocation5 [shape = 's32[1]{0}', space=sflag, size = 0x4, scoped, tag = 'scoped memory for msse_loss.1']
    %10 = vsyncpa [#allocation3], 0
    %11 = vsyncpa [#allocation5], 0
    // Predicated region
    $region2: #{msse_loss.1} parent=1 // pred_check
      _
    $region3: #{msse_loss.1} parent=1 // pred_check_branch
      %13 = sbr.rel (0) target = $region5
    $region4: #{msse_loss.1} parent=1 // pred_region
      _
    $region5: #{msse_loss.1} parent=1 // pred_fallthru
      _
    // Predicated region
    $region6: #{msse_loss.1} parent=1 // pred_check
      _
    $region7: #{msse_loss.1} parent=1 // pred_check_branch
      %15 = sbr.rel (0) target = $region9
    $region8: #{msse_loss.1} parent=1 // pred_region
      _
    $region9: #{msse_loss.1} parent=1 // pred_fallthru
      _
    // Predicated region
    $region10: #{msse_loss.1} parent=1 // pred_check
      _
    $region11: #{msse_loss.1} parent=1 // pred_check_branch
      %17 = sbr.rel (0) target = $region13
    $region12: #{msse_loss.1} parent=1 // pred_region
      _
    $region13: #{msse_loss.1} parent=1 // pred_fallthru
      _
    %s18 = smul.u32 0, 2
    %v19 = vlaneseq
    %v20 = vshrl.u32 %v19, 7
    %v21 = vstv %s18
    %v22 = vadd.s32 %v21, %v20
    %vm23 = vcmp.lt.s32.totalorder %v22, 2
    %v24 = vld [vmem:[%s2] sm:$0xff]
    %v25 = vld [vmem:[%s2 + $0x8] sm:$0xff]
    %v26 = vld [vmem:[%s1] sm:$0xff]
    %v27 = vld [vmem:[%s1 + $0x8] sm:$0xff]
    %v28 = vsub.f32 %v24, %v26
    %v29 = vsub.f32 %v25, %v27
    %v30 = vmul.f32 %v28, %v28
    %v31 = vmul.f32 %v29, %v29
    %vm32 = vcmask 31744
    %v33 = vsel %vm32, %v30, 0.0
    %v34 = vrot.slane %v33, 4
    %v35 = vadd.f32 %v33, %v34
    %v36 = vrot.slane %v35, 2
    %v37 = vadd.f32 %v35, %v36
    %v38 = vrot.slane %v37, 1
    %v39 = vadd.f32 %v37, %v38
    %v40 = vsel %vm32, %v31, 0.0
    %v41 = vrot.slane %v40, 4
    %v42 = vadd.f32 %v40, %v41
    %v43 = vrot.slane %v42, 2
    %v44 = vadd.f32 %v42, %v43
    %v45 = vrot.slane %v44, 1
    %v46 = vadd.f32 %v44, %v45
    %v47 = vrcp.pop 8.0
    %v48 = vmul.f32 %v39, %v47
    %v49 = vmul.f32 %v46, %v47
    %v50 = vld [vmem:[%s0] sm:$0xff]
    %v51 = vld [vmem:[%s0 + $0x8] sm:$0xff]
    %v52 = vld [vmem:[%s0 + $0x10] sm:$0xff]
    %v53 = vld [vmem:[%s0 + $0x18] sm:$0xff]
    %v54 = vld [vmem:[%s0 + $0x20] sm:$0xf]
    %v55 = vld [vmem:[%s0 + $0x28] sm:$0xff]
    %v56 = vld [vmem:[%s0 + $0x30] sm:$0xff]
    %v57 = vld [vmem:[%s0 + $0x38] sm:$0xff]
    %v58 = vld [vmem:[%s0 + $0x40] sm:$0xff]
    %v59 = vld [vmem:[%s0 + $0x48] sm:$0xf]
    %vm70 = vcmask 1046528
    %v71 = vrot.slane %v50, 1
    %v72 = vrot.slane %v51, 1
    %v73 = vsel %vm70, %v71, %v72
    %v74 = vrot.slane %v52, 1
    %v75 = vsel %vm70, %v72, %v74
    %v76 = vrot.slane %v53, 1
    %v77 = vsel %vm70, %v74, %v76
    %v78 = vrot.slane %v54, 1
    %v79 = vsel %vm70, %v76, %v78
    %v80 = vrot.slane %v55, 1
    %v81 = vrot.slane %v56, 1
    %v82 = vsel %vm70, %v80, %v81
    %v83 = vrot.slane %v57, 1
    %v84 = vsel %vm70, %v81, %v83
    %v85 = vrot.slane %v58, 1
    %v86 = vsel %vm70, %v83, %v85
    %v87 = vrot.slane %v59, 1
    %v88 = vsel %vm70, %v85, %v87
    %v99 = vsub.f32 %v50, %v73
    %v100 = vsub.f32 %v51, %v75
    %v101 = vsub.f32 %v52, %v77
    %v102 = vsub.f32 %v53, %v79
    %v103 = vsub.f32 %v54, %v78
    %v104 = vsub.f32 %v55, %v82
    %v105 = vsub.f32 %v56, %v84
    %v106 = vsub.f32 %v57, %v86
    %v107 = vsub.f32 %v58, %v88
    %v108 = vsub.f32 %v59, %v87
    %v109 = vmul.f32 %v99, %v99
    %v110 = vmul.f32 %v100, %v100
    %v111 = vmul.f32 %v101, %v101
    %v112 = vmul.f32 %v102, %v102
    %v113 = vmul.f32 %v103, %v103
    %v114 = vmul.f32 %v104, %v104
    %v115 = vmul.f32 %v105, %v105
    %v116 = vmul.f32 %v106, %v106
    %v117 = vmul.f32 %v107, %v107
    %v118 = vmul.f32 %v108, %v108
    %vm129 = vcmask 1041408
    %v130 = vrot.slane %v109, 6
    %v131 = vrot.slane %v110, 6
    %v132 = vsel %vm129, %v130, %v131
    %v133 = vrot.slane %v111, 6
    %v134 = vsel %vm129, %v131, %v133
    %v135 = vrot.slane %v112, 6
    %v136 = vsel %vm129, %v133, %v135
    %v137 = vrot.slane %v113, 6
    %v138 = vsel %vm129, %v135, %v137
    %v139 = vrot.slane %v114, 6
    %v140 = vrot.slane %v115, 6
    %v141 = vsel %vm129, %v139, %v140
    %v142 = vrot.slane %v116, 6
    %v143 = vsel %vm129, %v140, %v142
    %v144 = vrot.slane %v117, 6
    %v145 = vsel %vm129, %v142, %v144
    %v146 = vrot.slane %v118, 6
    %v147 = vsel %vm129, %v144, %v146
    %v156 = vsel %vm32, %v132, 0.0
    %v157 = vsel %vm32, %v134, 0.0
    %v158 = vadd.f32 %v156, %v157
    %v159 = vsel %vm32, %v136, 0.0
    %v160 = vadd.f32 %v158, %v159
    %vm161 = vcmask 28672
    %v162 = vsel %vm161, %v138, 0.0
    %v163 = vadd.f32 %v160, %v162
    %v164 = vrot.slane %v163, 4
    %v165 = vadd.f32 %v163, %v164
    %v166 = vrot.slane %v165, 2
    %v167 = vadd.f32 %v165, %v166
    %v168 = vrot.slane %v167, 1
    %v169 = vadd.f32 %v167, %v168
    %v170 = vsel %vm32, %v141, 0.0
    %v171 = vsel %vm32, %v143, 0.0
    %v172 = vadd.f32 %v170, %v171
    %v173 = vsel %vm32, %v145, 0.0
    %v174 = vadd.f32 %v172, %v173
    %v175 = vsel %vm161, %v147, 0.0
    %v176 = vadd.f32 %v174, %v175
    %v177 = vrot.slane %v176, 4
    %v178 = vadd.f32 %v176, %v177
    %v179 = vrot.slane %v178, 2
    %v180 = vadd.f32 %v178, %v179
    %v181 = vrot.slane %v180, 1
    %v182 = vadd.f32 %v180, %v181
    %v183 = vrcp.pop 29.0
    %v184 = vmul.f32 %v169, %v183
    %v185 = vmul.f32 %v182, %v183
    %v186 = vadd.f32 %v184, 1e-06
    %v187 = vadd.f32 %v185, 1e-06
    %v188 = vrcp.pop %v186
    %v189 = vrcp.pop %v187
    %v190 = vmul.f32 %v48, %v188
    %v191 = vmul.f32 %v49, %v189
    %vm194 = vcmask 1041409
    %v195 = vsel %vm194, %v191, %v190
    %vm197 = vcmask 25600
    %v198 = vsel %vm197, %v195, 0.0
    %199 = vadd.xlane.f32.xlu0 %v198
    %v200 = vpop.xlane.xlu0 %199
    %v201 = vsel %vm23, %v200, 0.0
    %vm202 = vcmask 1024
    %v203 = vsel %vm202, %v201, 0.0
    %204 = vadd.xlane.f32.xlu0 %v203
    %v205 = vpop.xlane.xlu0 %204
    %v206 = vrot.slane %v205, 4
    %v207 = vadd.f32 %v205, %v206
    %v208 = vrot.slane %v207, 2
    %v209 = vadd.f32 %v207, %v208
    %v210 = vrot.slane %v209, 1
    %v211 = vadd.f32 %v209, %v210
    %s212 = vtos %v211
    %s213 = scalar_lea.smem [#allocation2], 0
    %214 = sst [smem:[%s213]] %s212
    %vm215 = vcmp.ne.f32.partialorder %v24, %v24
    %vm216 = vcmp.ne.f32.partialorder %v25, %v25
    %v217 = vsel %vm23, 1, 0
    %v218 = vlaneseq
    %v219 = vshrl.u32 %v218, 7
    %v220 = vsub.s32 0, %v219
    %v221 = vrot.slane %v217, %v220
    %v222 = vlaneseq
    %v223 = vshrl.u32 %v222, 7
    %v224 = vsub.s32 1, %v223
    %v225 = vrot.slane %v217, %v224
    %vm226 = vcmp.ne.s32.totalorder %v221, 0
    %vm227 = vcmp.ne.s32.totalorder %v225, 0
    %v228 = vsel %vm226, 1, 0
    %v229 = vsel %vm227, 1, 0
    %vm230 = vcmp.eq.s32.totalorder %v228, 1
    %vm231 = vcmp.eq.s32.totalorder %v229, 1
    %vm232 = vmand %vm215, %vm230
    %vm233 = vmand %vm216, %vm231
    %v234 = vsel %vm232, 1.0, 0.0
    %v235 = vsel %vm233, 1.0, 0.0
    %v236 = vsel %vm32, %v234, -inf
    %v237 = vsel %vm32, %v235, -inf
    %v238 = vmax.f32 %v236, %v237
    %239 = vmax.xlane.f32.xlu0 %v238
    %v240 = vpop.xlane.xlu0 %239
    %v241 = vrot.slane %v240, 4
    %v242 = vmax.f32 %v240, %v241
    %v243 = vrot.slane %v242, 2
    %v244 = vmax.f32 %v242, %v243
    %v245 = vrot.slane %v244, 1
    %v246 = vmax.f32 %v244, %v245
    %s247 = vtos %v246
    %p248 = scmp.gt.f32.partialorder %s247, 0.0
    %s249 = scalar_select %p248, 1, 0
    %s250 = scalar_lea.smem [#allocation4], 0
    %251 = sst [smem:[%s250]] %s249
    // Predicated region
    $region14: #{msse_loss.1} parent=1 // pred_check
      _
    $region15: #{msse_loss.1} parent=1 // pred_check_branch
      %253 = sbr.rel (0) target = $region17
    $region16: #{msse_loss.1} parent=1 // pred_region
      %s255 = ssub.s32 16, 16
      %256 = vsyncadd [#allocation3], %s255
      %259 = dma.smem_to_hbm [#allocation2], 16, %s3, [#allocation3]
    $region17: #{msse_loss.1} parent=1 // pred_fallthru
      _
    // Predicated region
    $region18: #{msse_loss.1} parent=1 // pred_check
      _
    $region19: #{msse_loss.1} parent=1 // pred_check_branch
      %261 = sbr.rel (0) target = $region21
    $region20: #{msse_loss.1} parent=1 // pred_region
      %s263 = ssub.s32 16, 16
      %264 = vsyncadd [#allocation5], %s263
      %267 = dma.smem_to_hbm [#allocation4], 16, %s4, [#allocation5]
    $region21: #{msse_loss.1} parent=1 // pred_fallthru
      _
    // Predicated region
    $region22: #{msse_loss.1} parent=1 // pred_check
      _
    $region23: #{msse_loss.1} parent=1 // pred_check_branch
      %269 = sbr.rel (0) target = $region25
    $region24: #{msse_loss.1} parent=1 // pred_region
      %270 = dma.done [#allocation3], 16
    $region25: #{msse_loss.1} parent=1 // pred_fallthru
      _
    // Predicated region
    $region26: #{msse_loss.1} parent=1 // pred_check
      _
    $region27: #{msse_loss.1} parent=1 // pred_check_branch
      %272 = sbr.rel (0) target = $region29
    $region28: #{msse_loss.1} parent=1 // pred_region
      %273 = dma.done [#allocation5], 16
    $region29: #{msse_loss.1} parent=1 // pred_fallthru
      _
    %274 = sfence
    %275 = vsyncpa [#allocation3], 1
    %276 = vsyncpa [#allocation5], 1

</llo_original>
